<compile_context>
chip_gen: v7x
topology: tpu7x:2x2x1
jax: 0.10.0
libtpu: 0.0.40
codegen_flags: <defaults>
</compile_context>

<pallas_src>
import functools

import jax
import jax.numpy as jnp
from jax.experimental import pallas as pl
from jax.experimental.pallas import tpu as pltpu


EPS = 1e-8
LN_EPS = 1e-6


def _tensorcores_per_device() -> int:
    """Best-effort TensorCore count of the local Pallas device (1 if unknown)."""
    try:
        kind = jax.devices()[0].device_kind.lower()
    except Exception:  # pragma: no cover - defensive
        return 1
    # v7x (2 TCs / chip) and v4 / v5p megacore expose 2 TCs per device.
    if "7" in kind or "v4" in kind or "v5p" in kind:
        return 2
    return 1


def iieub_kernel(x_ref, xp_ref, params_ref, o_ref, *, inv_hw):
    # x_ref:      (bb, C,   HWp)  input dtype (f32 or bf16)   conv output
    # xp_ref:     (bb, Cin, HWp)  input dtype                 conv input
    # params_ref: (C, 4)          f32  columns = [gamma, beta, bound, 1/(||w||+eps)]
    f32 = jnp.float32
    x = x_ref[...]
    xp = xp_ref[...]

    params = params_ref[...]
    gamma = params[:, 0:1][None]      # (1, C, 1)
    beta = params[:, 1:2][None]       # (1, C, 1)
    bound = params[:, 2:3][None]      # (1, C, 1)
    filt_len = params[:, 3:4][None]   # (1, C, 1) precomputed 1/(||w||_2 + eps)

    # --- per-pixel channel norm of x_pre: f32 accumulation, single rsqrt (EUP).
    # Spatially zero-padded lanes give rsqrt(eps^2) = 1/eps (finite); those lanes
    # are multiplied by x == 0 and their stores discarded, so no NaN path.
    xp32 = xp.astype(f32)
    xpre_len_inv = jax.lax.rsqrt(
        jnp.sum(xp32 * xp32, axis=1, keepdims=True) + EPS * EPS)      # (bb, 1, HWp)

    # --- GAP over the *true* spatial extent + LayerNorm(C) + sigmoid (tiny, f32).
    s = jnp.sum(x.astype(f32), axis=2, keepdims=True) * inv_hw        # (bb, C, 1)
    mu = jnp.mean(s, axis=1, keepdims=True)
    var = jnp.mean(jnp.square(s - mu), axis=1, keepdims=True)
    shift = jax.nn.sigmoid(
        (s - mu) * jax.lax.rsqrt(var + LN_EPS) * gamma + beta)        # (bb, C, 1)

    # --- full-size elementwise chain in the input dtype (bf16 stays bf16 on
    # v6e/v7x).  Only ~9 full-size ops per element; exp overflow on the
    # mask >= 0 lanes is discarded by the select (no clamp needed).
    cdt = x.dtype
    sb = (shift - bound).astype(cdt)                                  # (bb, C, 1)
    bnd = bound.astype(cdt)                                           # (1, C, 1)
    mask = sb + (filt_len.astype(cdt) * x) * xpre_len_inv.astype(cdt)
    factor = jnp.where(mask < 0, bnd * jnp.exp(mask), bnd + mask)
    o_ref[...] = (x * factor).astype(o_ref.dtype)


def iieub_forward(x, x_pre, filt_weight, ln_weight, ln_bias, bound,
                  *, out_dtype=jnp.bfloat16):
    """IIEU-B forward (kernel_size=(1,1), stride=(1,1) path).

    x: (B, C, H, W) conv output, x_pre: (B, Cin, H, W) conv input,
    filt_weight: (C, Cin, kH, kW).  Inputs are read at their stored dtype
    (no wrapper cast pass); output is written in `out_dtype` (default bf16).
    All statistics / LayerNorm / sigmoid / exp accumulate in f32 in-kernel.
    """
    B, C, H, W = x.shape
    Cin = x_pre.shape[1]
    HW = H * W

    # Batch-invariant per-filter norm reciprocal, hoisted out of the kernel.
    w_flat = filt_weight.reshape(C, -1).astype(jnp.float32)
    filt_len_inv = 1.0 / (jnp.sqrt(jnp.sum(w_flat * w_flat, axis=1)) + EPS)     # (C,)

    # All per-channel parameters packed into a single (C, 4) VMEM block.
    params = jnp.stack(
        [ln_weight.reshape(C).astype(jnp.float32),
         ln_bias.reshape(C).astype(jnp.float32),
         bound.reshape(C).astype(jnp.float32),
         filt_len_inv],
        axis=1)                                                                  # (C, 4)

    # No channel pad and no dtype-cast pass: a block dim equal to the full
    # array dim (Cin, HW) is exempt from the (8, 128) divisibility rule.
    x3 = x.reshape(B, C, HW)
    xp3 = x_pre.reshape(B, Cin, HW)

    # Lane-pad only truly tiny spatial maps (HW < 128), where every store would
    # otherwise be masked; zeros do not perturb the GAP (true inv_hw) or norms.
    HWp = HW if HW >= 128 else 128
    if HWp != HW:
        x3 = jnp.pad(x3, ((0, 0), (0, 0), (0, HWp - HW)))
        xp3 = jnp.pad(xp3, ((0, 0), (0, 0), (0, HWp - HW)))

    # Whole batch in one grid step on single-TC chips (v5e/v6e: no per-step
    # overhead, one big DMA); one batch per 'parallel' step on 2-TC devices.
    bb = 1 if (_tensorcores_per_device() > 1 and B > 1) else B
    nb = pl.cdiv(B, bb)

    out = pl.pallas_call(
        functools.partial(iieub_kernel, inv_hw=1.0 / HW),
        out_shape=jax.ShapeDtypeStruct((B, C, HWp), out_dtype),
        grid_spec=pltpu.PrefetchScalarGridSpec(
            num_scalar_prefetch=0,
            grid=(nb,),
            in_specs=[
                pl.BlockSpec((bb, C, HWp), lambda b: (b, 0, 0)),
                pl.BlockSpec((bb, Cin, HWp), lambda b: (b, 0, 0)),
                pl.BlockSpec((C, 4), lambda b: (0, 0)),
            ],
            out_specs=pl.BlockSpec((bb, C, HWp), lambda b: (b, 0, 0)),
        ),
        compiler_params=pltpu.CompilerParams(
            dimension_semantics=("parallel",),
            vmem_limit_bytes=64 * 1024 * 1024,   # explicit budget (v7x: 64 MiB VMEM)
        ),
    )(x3, xp3, params)

    if HWp != HW:
        out = out[:, :, :HW]
    return out.reshape(B, C, H, W)


def iieub_reference(x, x_pre, filt_weight, ln_weight, ln_bias, bound):
    """Pure-JAX f32 reference mirroring the PyTorch forward (kernel_size=1, stride=1)."""
    B, C, H, W = x.shape
    x_pre_vec_len = 1.0 / (jnp.sqrt(jnp.sum(x_pre * x_pre, axis=1, keepdims=True)) + EPS)
    w_flat = filt_weight.reshape(C, -1)
    filter_len = (1.0 / (jnp.sqrt(jnp.sum(w_flat * w_flat, axis=1)) + EPS)).reshape(1, C, 1, 1)
    stats = jnp.mean(x, axis=(2, 3))                       # (B, C)
    mu = jnp.mean(stats, axis=-1, keepdims=True)
    var = jnp.mean((stats - mu) ** 2, axis=-1, keepdims=True)
    normed = (stats - mu) / jnp.sqrt(var + LN_EPS) * ln_weight + ln_bias
    shift = jax.nn.sigmoid(normed)[:, :, None, None]       # (B, C, 1, 1)
    b4 = bound.reshape(1, C, 1, 1)
    mask = -b4 + shift + filter_len * x * x_pre_vec_len
    return jnp.where(mask < 0.0,
                     b4 * x * jnp.exp(jnp.minimum(mask, 0.0)),
                     b4 * x + mask * x)


if __name__ == "__main__":
    # Module shapes: inplanes=4, planes=8, kernel_size=(1,1), stride=(1,1)
    B, Cin, C, H, W = 2, 4, 8, 16, 16

    key = jax.random.PRNGKey(0)
    k_x, k_xp, k_w = jax.random.split(key, 3)

    x = jax.random.normal(k_x, (B, C, H, W), jnp.float32)           # conv output
    x_pre = jax.random.normal(k_xp, (B, Cin, H, W), jnp.float32)    # conv input
    filt_weight = jax.random.normal(k_w, (C, Cin, 1, 1), jnp.float32) * 0.1

    # Deterministic parameter init (as in __init__)
    ln_weight = jnp.full((C,), 0.01, dtype=jnp.float32)   # nn.init.constant_(norm.weight, 0.01)
    ln_bias = jnp.zeros((C,), dtype=jnp.float32)          # nn.init.constant_(norm.bias, 0.0)
    bound = jnp.full((C,), 0.05, dtype=jnp.float32)       # 0.05 * ones(1, planes, 1, 1)

    out = iieub_forward(x, x_pre, filt_weight, ln_weight, ln_bias, bound)
    out = jax.block_until_ready(out)

    ref = iieub_reference(x, x_pre, filt_weight, ln_weight, ln_bias, bound)
    assert out.shape == (B, C, H, W)
    assert out.dtype == jnp.bfloat16
    # Inputs are consumed in f32; the only quantization is the bf16 output
    # write plus tiny eps-placement differences in the rsqrt-based norms.
    assert jnp.allclose(out.astype(jnp.float32), ref, rtol=2e-2, atol=2e-3), "mismatch vs reference"

    print("KERNEL_OK")
</pallas_src>

<mosaic_0001>
module attributes {stable_mosaic.version = 11 : i64} {
  func.func @iieub_kernel(%arg0: i32, %arg1: memref<2x8x256xf32, #tpu.memory_space<vmem>>, %arg2: memref<2x4x256xf32, #tpu.memory_space<vmem>>, %arg3: memref<8x4xf32, #tpu.memory_space<vmem>>, %arg4: memref<2x8x256xbf16, #tpu.memory_space<vmem>>) attributes {dimension_semantics = [#tpu.dimension_semantics<parallel>], iteration_bounds = array<i64: 1>, scalar_prefetch = 0 : i64, scratch_operands = 0 : i64, tpu.core_type = #tpu.core_type<tc>, window_params = [{transform_indices = @transform_0, window_bounds = array<i64: 2, 8, 256>}, {transform_indices = @transform_1, window_bounds = array<i64: 2, 4, 256>}, {pipeline_mode = #tpu.pipeline_mode<synchronous>, transform_indices = @transform_2, window_bounds = array<i64: 8, 4>}, {transform_indices = @transform_3, window_bounds = array<i64: 2, 8, 256>}]} {
    %c0 = arith.constant 0 : index
    %c0_0 = arith.constant 0 : index
    %c0_1 = arith.constant 0 : index
    %0 = vector.load %arg1[%c0, %c0_0, %c0_1] : memref<2x8x256xf32, #tpu.memory_space<vmem>>, vector<2x8x256xf32>
    %c0_2 = arith.constant 0 : index
    %c0_3 = arith.constant 0 : index
    %c0_4 = arith.constant 0 : index
    %1 = vector.load %arg2[%c0_2, %c0_3, %c0_4] : memref<2x4x256xf32, #tpu.memory_space<vmem>>, vector<2x4x256xf32>
    %c0_5 = arith.constant 0 : index
    %c0_6 = arith.constant 0 : index
    %2 = vector.load %arg3[%c0_5, %c0_6] : memref<8x4xf32, #tpu.memory_space<vmem>>, vector<8x4xf32>
    %3 = vector.extract_strided_slice %2 {offsets = [0, 0], sizes = [8, 1], strides = [1, 1]} : vector<8x4xf32> to vector<8x1xf32>
    %4 = vector.shape_cast %3 : vector<8x1xf32> to vector<1x8x1xf32>
    %5 = vector.extract_strided_slice %2 {offsets = [0, 1], sizes = [8, 1], strides = [1, 1]} : vector<8x4xf32> to vector<8x1xf32>
    %6 = vector.shape_cast %5 : vector<8x1xf32> to vector<1x8x1xf32>
    %7 = vector.extract_strided_slice %2 {offsets = [0, 2], sizes = [8, 1], strides = [1, 1]} : vector<8x4xf32> to vector<8x1xf32>
    %8 = vector.shape_cast %7 : vector<8x1xf32> to vector<1x8x1xf32>
    %9 = vector.extract_strided_slice %2 {offsets = [0, 3], sizes = [8, 1], strides = [1, 1]} : vector<8x4xf32> to vector<8x1xf32>
    %10 = vector.shape_cast %9 : vector<8x1xf32> to vector<1x8x1xf32>
    %11 = arith.mulf %1, %1 : vector<2x4x256xf32>
    %cst = arith.constant dense<0.000000e+00> : vector<2x256xf32>
    %12 = vector.multi_reduction <add>, %11, %cst [1] : vector<2x4x256xf32> to vector<2x256xf32>
    %13 = vector.shape_cast %12 : vector<2x256xf32> to vector<2x1x256xf32>
    %cst_7 = arith.constant 1.000000e-16 : f32
    %14 = vector.broadcast %cst_7 : f32 to vector<2x1x256xf32>
    %15 = arith.addf %13, %14 : vector<2x1x256xf32>
    %16 = math.rsqrt %15 : vector<2x1x256xf32>
    %cst_8 = arith.constant dense<0.000000e+00> : vector<2x8xf32>
    %17 = vector.multi_reduction <add>, %0, %cst_8 [2] : vector<2x8x256xf32> to vector<2x8xf32>
    %18 = vector.shape_cast %17 : vector<2x8xf32> to vector<2x8x1xf32>
    %cst_9 = arith.constant 3.906250e-03 : f32
    %19 = vector.broadcast %cst_9 : f32 to vector<2x8x1xf32>
    %20 = arith.mulf %18, %19 : vector<2x8x1xf32>
    %cst_10 = arith.constant dense<0.000000e+00> : vector<2x1xf32>
    %21 = vector.multi_reduction <add>, %20, %cst_10 [1] : vector<2x8x1xf32> to vector<2x1xf32>
    %22 = vector.shape_cast %21 : vector<2x1xf32> to vector<2x1x1xf32>
    %cst_11 = arith.constant 8.000000e+00 : f32
    %23 = vector.broadcast %cst_11 : f32 to vector<2x1x1xf32>
    %24 = arith.divf %22, %23 : vector<2x1x1xf32>
    %25 = vector.broadcast %24 : vector<2x1x1xf32> to vector<2x8x1xf32>
    %26 = arith.subf %20, %25 : vector<2x8x1xf32>
    %27 = arith.mulf %26, %26 : vector<2x8x1xf32>
    %cst_12 = arith.constant dense<0.000000e+00> : vector<2x1xf32>
    %28 = vector.multi_reduction <add>, %27, %cst_12 [1] : vector<2x8x1xf32> to vector<2x1xf32>
    %29 = vector.shape_cast %28 : vector<2x1xf32> to vector<2x1x1xf32>
    %cst_13 = arith.constant 8.000000e+00 : f32
    %30 = vector.broadcast %cst_13 : f32 to vector<2x1x1xf32>
    %31 = arith.divf %29, %30 : vector<2x1x1xf32>
    %32 = vector.broadcast %24 : vector<2x1x1xf32> to vector<2x8x1xf32>
    %33 = arith.subf %20, %32 : vector<2x8x1xf32>
    %cst_14 = arith.constant 9.99999997E-7 : f32
    %34 = vector.broadcast %cst_14 : f32 to vector<2x1x1xf32>
    %35 = arith.addf %31, %34 : vector<2x1x1xf32>
    %36 = math.rsqrt %35 : vector<2x1x1xf32>
    %37 = vector.broadcast %36 : vector<2x1x1xf32> to vector<2x8x1xf32>
    %38 = arith.mulf %33, %37 : vector<2x8x1xf32>
    %39 = vector.broadcast %4 : vector<1x8x1xf32> to vector<2x8x1xf32>
    %40 = arith.mulf %38, %39 : vector<2x8x1xf32>
    %41 = vector.broadcast %6 : vector<1x8x1xf32> to vector<2x8x1xf32>
    %42 = arith.addf %40, %41 : vector<2x8x1xf32>
    %43 = arith.negf %42 : vector<2x8x1xf32>
    %44 = math.exp %43 : vector<2x8x1xf32>
    %cst_15 = arith.constant 1.000000e+00 : f32
    %45 = vector.broadcast %cst_15 : f32 to vector<2x8x1xf32>
    %46 = arith.addf %45, %44 : vector<2x8x1xf32>
    %47 = arith.divf %45, %46 : vector<2x8x1xf32>
    %48 = vector.broadcast %8 : vector<1x8x1xf32> to vector<2x8x1xf32>
    %49 = arith.subf %47, %48 : vector<2x8x1xf32>
    %50 = vector.broadcast %10 : vector<1x8x1xf32> to vector<2x8x256xf32>
    %51 = arith.mulf %50, %0 : vector<2x8x256xf32>
    %52 = vector.broadcast %16 : vector<2x1x256xf32> to vector<2x8x256xf32>
    %53 = arith.mulf %51, %52 : vector<2x8x256xf32>
    %54 = vector.broadcast %49 : vector<2x8x1xf32> to vector<2x8x256xf32>
    %55 = arith.addf %54, %53 : vector<2x8x256xf32>
    %cst_16 = arith.constant 0.000000e+00 : f32
    %56 = vector.broadcast %cst_16 : f32 to vector<2x8x256xf32>
    %57 = arith.cmpf olt, %55, %56 : vector<2x8x256xf32>
    %58 = math.exp %55 : vector<2x8x256xf32>
    %59 = vector.broadcast %8 : vector<1x8x1xf32> to vector<2x8x256xf32>
    %60 = arith.mulf %59, %58 : vector<2x8x256xf32>
    %61 = vector.broadcast %8 : vector<1x8x1xf32> to vector<2x8x256xf32>
    %62 = arith.addf %61, %55 : vector<2x8x256xf32>
    %63 = arith.select %57, %60, %62 : vector<2x8x256xi1>, vector<2x8x256xf32>
    %64 = arith.mulf %0, %63 : vector<2x8x256xf32>
    %65 = arith.truncf %64 : vector<2x8x256xf32> to vector<2x8x256xbf16>
    %c0_17 = arith.constant 0 : index
    %c0_18 = arith.constant 0 : index
    %c0_19 = arith.constant 0 : index
    %66 = vector.load %arg4[%c0_17, %c0_18, %c0_19] : memref<2x8x256xbf16, #tpu.memory_space<vmem>>, vector<2x8x256xbf16>
    tpu.vector_store %arg4[%c0_17, %c0_18, %c0_19], %65 {strides = array<i32>} : memref<2x8x256xbf16, #tpu.memory_space<vmem>>, vector<2x8x256xbf16>,
    return
  }
  func.func @transform_0(%arg0: i32) -> (i32, i32, i32) {
    %c0_i32 = arith.constant 0 : i32
    %c0_i32_0 = arith.constant 0 : i32
    %c0_i32_1 = arith.constant 0 : i32
    return %arg0, %c0_i32, %c0_i32_0 : i32, i32, i32
  }
  func.func @transform_1(%arg0: i32) -> (i32, i32, i32) {
    %c0_i32 = arith.constant 0 : i32
    %c0_i32_0 = arith.constant 0 : i32
    %c0_i32_1 = arith.constant 0 : i32
    return %arg0, %c0_i32, %c0_i32_0 : i32, i32, i32
  }
  func.func @transform_2(%arg0: i32) -> (i32, i32) {
    %c0_i32 = arith.constant 0 : i32
    %c0_i32_0 = arith.constant 0 : i32
    %c0_i32_1 = arith.constant 0 : i32
    return %c0_i32, %c0_i32_0 : i32, i32
  }
  func.func @transform_3(%arg0: i32) -> (i32, i32, i32) {
    %c0_i32 = arith.constant 0 : i32
    %c0_i32_0 = arith.constant 0 : i32
    %c0_i32_1 = arith.constant 0 : i32
    return %arg0, %c0_i32, %c0_i32_0 : i32, i32, i32
  }
}

</mosaic_0001>

<llo_original>
// kernel: tpu_custom_call.1
$region0: #{tpu_custom_call.1}
  #allocation0 [shape = 'u32[]', space=smem, size = 0x4, offset = 0x4, fixed_abs, tag = 'smem constant byte address 0x4 - core index']
  #allocation1 [shape = 'u32[144,128]{1,0:T(1,128)}', space=vmem, size = 0x12000, scoped, tag = 'internal scratch']
  %s0 = inlined_call_operand.hbm [shape: f32[2,8,256], index: 0, kind: input, shape index: {}]
  %s1 = inlined_call_operand.hbm [shape: f32[2,4,256], index: 1, kind: input, shape index: {}]
  %s2 = inlined_call_operand.hbm [shape: f32[8,4], index: 2, kind: input, shape index: {}]
  %s3 = inlined_call_operand.hbm [shape: bf16[2,8,256], index: 3, kind: output, shape index: {}]
  %s4 = sld [smem:[#allocation0]]
  $region34: #{tpu_custom_call.1} parent=0
    _
  %s6 = ssub.s32 1, %s4
  %s7 = scalar_select 0, %s6, %s4
  $region1: #{tpu_custom_call.1} parent=0
    #allocation2 [shape = 'u8[16384]{0}', space=vmem, size = 0x4000, scoped, tag = 'input window, operand 0, single buffered']
    #allocation3 [shape = 's32[1]{0}', space=sflag, size = 0x4, scoped, tag = 'scoped memory for tpu_custom_call.1']
    #allocation4 [shape = 's32[1]{0}', space=sflag, size = 0x4, scoped, tag = 'scoped memory for tpu_custom_call.1']
    #allocation5 [shape = 'u8[8192]{0}', space=vmem, size = 0x2000, scoped, tag = 'input window, operand 1, single buffered']
    #allocation6 [shape = 's32[1]{0}', space=sflag, size = 0x4, scoped, tag = 'scoped memory for tpu_custom_call.1']
    #allocation7 [shape = 'u8[4096]{0}', space=vmem, size = 0x1000, scoped, tag = 'input window, operand 2, single buffered']
    #allocation8 [shape = 'u8[8192]{0}', space=vmem, size = 0x2000, scoped, tag = 'output window, operand 0, single buffered']
    %8 = vsyncpa [#allocation3], 0
    %9 = vsyncpa [#allocation6], 0
    %10 = vsyncpa [#allocation4], 0
    // Predicated region
    $region2: #{tpu_custom_call.1} parent=1 // pred_check
      _
    $region3: #{tpu_custom_call.1} parent=1 // pred_check_branch
      %12 = sbr.rel (0) target = $region5
    $region4: #{tpu_custom_call.1} parent=1 // pred_region
      %s14 = ssub.s32 512, 512
      %15 = vsyncadd [#allocation3], %s14
      %s16 = sshll.u32 [#allocation2], 4
      %s17 = int_to_ptr.vmem [resolvable:$true] %s16
      %22 = dma.hbm_to_vmem [thread:$0]  %s0, 512, %s17, [#allocation3], 256, 256, 16
    $region5: #{tpu_custom_call.1} parent=1 // pred_fallthru
      _
    // Predicated region
    $region6: #{tpu_custom_call.1} parent=1 // pred_check
      _
    $region7: #{tpu_custom_call.1} parent=1 // pred_check_branch
      %24 = sbr.rel (0) target = $region9
    $region8: #{tpu_custom_call.1} parent=1 // pred_region
      %s26 = ssub.s32 256, 256
      %27 = vsyncadd [#allocation6], %s26
      %s28 = sshll.u32 [#allocation5], 4
      %s29 = int_to_ptr.vmem [resolvable:$true] %s28
      %34 = dma.hbm_to_vmem [thread:$0]  %s1, 256, %s29, [#allocation6], 128, 128, 8
    $region9: #{tpu_custom_call.1} parent=1 // pred_fallthru
      _
    // Predicated region
    $region10: #{tpu_custom_call.1} parent=1 // pred_check
      _
    $region11: #{tpu_custom_call.1} parent=1 // pred_check_branch
      %36 = sbr.rel (0) target = $region13
    $region12: #{tpu_custom_call.1} parent=1 // pred_region
      %s38 = ssub.s32 128, 128
      %39 = vsyncadd [#allocation6], %s38
      %s41 = sshll.u32 [#allocation7], 4
      %s42 = int_to_ptr.vmem [resolvable:$true] %s41
      %44 = dma.hbm_to_vmem [thread:$0]  %s2, 128, %s42, [#allocation6]
    $region13: #{tpu_custom_call.1} parent=1 // pred_fallthru
      _
    // Predicated region
    $region14: #{tpu_custom_call.1} parent=1 // pred_check
      _
    $region15: #{tpu_custom_call.1} parent=1 // pred_check_branch
      %46 = sbr.rel (0) target = $region17
    $region16: #{tpu_custom_call.1} parent=1 // pred_region
      %47 = dma.done [#allocation3], 512
    $region17: #{tpu_custom_call.1} parent=1 // pred_fallthru
      _
    // Predicated region
    $region18: #{tpu_custom_call.1} parent=1 // pred_check
      _
    $region19: #{tpu_custom_call.1} parent=1 // pred_check_branch
      %49 = sbr.rel (0) target = $region21
    $region20: #{tpu_custom_call.1} parent=1 // pred_region
      %50 = dma.done [#allocation6], 256
    $region21: #{tpu_custom_call.1} parent=1 // pred_fallthru
      _
    // Predicated region
    $region22: #{tpu_custom_call.1} parent=1 // pred_check
      _
    $region23: #{tpu_custom_call.1} parent=1 // pred_check_branch
      %52 = sbr.rel (0) target = $region25
    $region24: #{tpu_custom_call.1} parent=1 // pred_region
      %53 = dma.done [#allocation6], 128
    $region25: #{tpu_custom_call.1} parent=1 // pred_fallthru
      _
    %v54 = vld [vmem:[#allocation2] sm:$0xff]
    %v55 = vld [vmem:[#allocation2 + $0x8] sm:$0xff]
    %v56 = vld [vmem:[#allocation2 + $0x10] sm:$0xff]
    %v57 = vld [vmem:[#allocation2 + $0x18] sm:$0xff]
    %v58 = vld [vmem:[#allocation5] sm:$0xff]
    %v59 = vld [vmem:[#allocation5 + $0x8] sm:$0xff]
    %v60 = vld [vmem:[#allocation7] sm:$0xff]
    %v61 = vmul.f32 %v58, %v58
    %v62 = vmul.f32 %v59, %v59
    %v65 = vcombine.high %v61, %v61
    %v66 = vcombine.high %v62, %v62
    %vm69 = vcmask 1043456
    %v70 = vsel %vm69, %v61, 0.0
    %v71 = vrot.slane %v70, 4
    %v72 = vadd.f32 %v70, %v71
    %v73 = vrot.slane %v72, 2
    %v74 = vadd.f32 %v72, %v73
    %v75 = vrot.slane %v74, 1
    %v76 = vadd.f32 %v74, %v75
    %v77 = vsel %vm69, %v65, 0.0
    %v78 = vrot.slane %v77, 4
    %v79 = vadd.f32 %v77, %v78
    %v80 = vrot.slane %v79, 2
    %v81 = vadd.f32 %v79, %v80
    %v82 = vrot.slane %v81, 1
    %v83 = vadd.f32 %v81, %v82
    %v84 = vsel %vm69, %v62, 0.0
    %v85 = vrot.slane %v84, 4
    %v86 = vadd.f32 %v84, %v85
    %v87 = vrot.slane %v86, 2
    %v88 = vadd.f32 %v86, %v87
    %v89 = vrot.slane %v88, 1
    %v90 = vadd.f32 %v88, %v89
    %v91 = vsel %vm69, %v66, 0.0
    %v92 = vrot.slane %v91, 4
    %v93 = vadd.f32 %v91, %v92
    %v94 = vrot.slane %v93, 2
    %v95 = vadd.f32 %v93, %v94
    %v96 = vrot.slane %v95, 1
    %v97 = vadd.f32 %v95, %v96
    %v98 = vadd.f32 %v76, 1e-16
    %v99 = vadd.f32 %v83, 1e-16
    %v100 = vadd.f32 %v90, 1e-16
    %v101 = vadd.f32 %v97, 1e-16
    %v102 = vrsqrt.pop %v98
    %v103 = vrsqrt.pop %v99
    %v104 = vrsqrt.pop %v100
    %v105 = vrsqrt.pop %v101
    %v106 = vadd.f32 %v54, %v55
    %107 = vadd.xlane.f32.xlu0 %v106
    %v108 = vpop.xlane.xlu0 %107
    %v109 = vadd.f32 %v56, %v57
    %110 = vadd.xlane.f32.xlu0 %v109
    %v111 = vpop.xlane.xlu0 %110
    %v112 = vmul.f32 %v108, 0.00390625
    %v113 = vmul.f32 %v111, 0.00390625
    %v114 = vrot.slane %v112, 4
    %v115 = vadd.f32 %v112, %v114
    %v116 = vrot.slane %v115, 2
    %v117 = vadd.f32 %v115, %v116
    %v118 = vrot.slane %v117, 1
    %v119 = vadd.f32 %v117, %v118
    %v120 = vrot.slane %v113, 4
    %v121 = vadd.f32 %v113, %v120
    %v122 = vrot.slane %v121, 2
    %v123 = vadd.f32 %v121, %v122
    %v124 = vrot.slane %v123, 1
    %v125 = vadd.f32 %v123, %v124
    %v126 = vrcp.pop 8.0
    %v127 = vmul.f32 %v119, %v126
    %v128 = vmul.f32 %v125, %v126
    %v129 = vsub.f32 %v112, %v127
    %v130 = vsub.f32 %v113, %v128
    %v131 = vmul.f32 %v129, %v129
    %v132 = vmul.f32 %v130, %v130
    %v133 = vrot.slane %v131, 4
    %v134 = vadd.f32 %v131, %v133
    %v135 = vrot.slane %v134, 2
    %v136 = vadd.f32 %v134, %v135
    %v137 = vrot.slane %v136, 1
    %v138 = vadd.f32 %v136, %v137
    %v139 = vrot.slane %v132, 4
    %v140 = vadd.f32 %v132, %v139
    %v141 = vrot.slane %v140, 2
    %v142 = vadd.f32 %v140, %v141
    %v143 = vrot.slane %v142, 1
    %v144 = vadd.f32 %v142, %v143
    %v145 = vmul.f32 %v138, %v126
    %v146 = vmul.f32 %v144, %v126
    %v147 = vadd.f32 %v145, 1e-06
    %v148 = vadd.f32 %v146, 1e-06
    %v149 = vrsqrt.pop %v147
    %v150 = vrsqrt.pop %v148
    %v151 = vmul.f32 %v129, %v149
    %v152 = vmul.f32 %v130, %v150
    %v153 = vmul.f32 %v151, %v60
    %v154 = vmul.f32 %v152, %v60
    %156 = vrot.lane.b32.xlu0 %v60, 127
    %v157 = vpop.permute.xlu0 %156
    %v159 = vadd.f32 %v153, %v157
    %v160 = vadd.f32 %v154, %v157
    %v161 = vxor.u32 %v159, 2147483648
    %v162 = vxor.u32 %v160, 2147483648
    %v163 = vmul.f32 %v161, 1.442695
    %v164 = vpow.pop %v163
    %v165 = vmul.f32 %v162, 1.442695
    %v166 = vpow.pop %v165
    %v167 = vadd.f32 %v164, 1.0
    %v168 = vadd.f32 %v166, 1.0
    %v169 = vrcp.pop %v167
    %v170 = vmul.f32 1.0, %v169
    %v171 = vrcp.pop %v168
    %v172 = vmul.f32 1.0, %v171
    %173 = vrot.lane.b32.xlu0 %v60, 126
    %v174 = vpop.permute.xlu0 %173
    %v176 = vsub.f32 %v170, %v174
    %v177 = vsub.f32 %v172, %v174
    %178 = vset.pattern.permute.xlu0 3
    %179 = vperm.xlu0 %178, %v60
    %v180 = vpop.permute.xlu0 %179
    %v182 = vmul.f32 %v180, %v54
    %v183 = vmul.f32 %v180, %v55
    %v184 = vmul.f32 %v180, %v56
    %v185 = vmul.f32 %v180, %v57
    %v186 = vmul.f32 %v182, %v102
    %v187 = vmul.f32 %v183, %v103
    %v188 = vmul.f32 %v184, %v104
    %v189 = vmul.f32 %v185, %v105
    %191 = vset.pattern.permute.xlu0 0
    %192 = vperm.xlu0 %191, %v176
    %v193 = vpop.permute.xlu0 %192
    %196 = vset.pattern.permute.xlu0 0
    %197 = vperm.xlu0 %196, %v177
    %v198 = vpop.permute.xlu0 %197
    %v200 = vadd.f32 %v193, %v186
    %v201 = vadd.f32 %v193, %v187
    %v202 = vadd.f32 %v198, %v188
    %v203 = vadd.f32 %v198, %v189
    %vm204 = vcmp.lt.f32.partialorder %v200, 0.0
    %vm205 = vcmp.lt.f32.partialorder %v201, 0.0
    %vm206 = vcmp.lt.f32.partialorder %v202, 0.0
    %vm207 = vcmp.lt.f32.partialorder %v203, 0.0
    %v208 = vmul.f32 %v200, 1.442695
    %v209 = vpow.pop %v208
    %v210 = vmul.f32 %v201, 1.442695
    %v211 = vpow.pop %v210
    %v212 = vmul.f32 %v202, 1.442695
    %v213 = vpow.pop %v212
    %v214 = vmul.f32 %v203, 1.442695
    %v215 = vpow.pop %v214
    %216 = vset.pattern.permute.xlu0 2
    %217 = vperm.xlu0 %216, %v60
    %v218 = vpop.permute.xlu0 %217
    %v220 = vmul.f32 %v218, %v209
    %v221 = vmul.f32 %v218, %v211
    %v222 = vmul.f32 %v218, %v213
    %v223 = vmul.f32 %v218, %v215
    %v224 = vadd.f32 %v218, %v200
    %v225 = vadd.f32 %v218, %v201
    %v226 = vadd.f32 %v218, %v202
    %v227 = vadd.f32 %v218, %v203
    %v228 = vsel %vm204, %v220, %v224
    %v229 = vsel %vm205, %v221, %v225
    %v230 = vsel %vm206, %v222, %v226
    %v231 = vsel %vm207, %v223, %v227
    %v232 = vmul.f32 %v54, %v228
    %v233 = vmul.f32 %v55, %v229
    %v234 = vmul.f32 %v56, %v230
    %v235 = vmul.f32 %v57, %v231
    %v236 = vpack.c.bf16 %v232, %v232
    %v237 = vpack.c.bf16 %v233, %v233
    %v238 = vpack.c.bf16 %v234, %v234
    %v239 = vpack.c.bf16 %v235, %v235
    %v244 = vunpack.c.l.b16 %v236
    %v245 = vunpack.c.l.b16 %v237
    %v246 = vunpack.c.l.b16 %v238
    %v247 = vunpack.c.l.b16 %v239
    %v248 = vpack.c.b16 %v245, %v244
    %v249 = vpack.c.b16 %v247, %v246
    %252 = vst [vmem:[#allocation8] sm:$0xff] %v248
    %253 = vst [vmem:[#allocation8 + $0x8] sm:$0xff] %v249
    // Predicated region
    $region26: #{tpu_custom_call.1} parent=1 // pred_check
      _
    $region27: #{tpu_custom_call.1} parent=1 // pred_check_branch
      %255 = sbr.rel (0) target = $region29
    $region28: #{tpu_custom_call.1} parent=1 // pred_region
      %s257 = ssub.s32 256, 256
      %258 = vsyncadd [#allocation4], %s257
      %s259 = sshll.u32 [#allocation8], 4
      %s260 = int_to_ptr.vmem [resolvable:$true] %s259
      %265 = dma.vmem_to_hbm [thread:$0]  %s260, 256, %s3, [#allocation4], 128, 128, 8
    $region29: #{tpu_custom_call.1} parent=1 // pred_fallthru
      _
    // Predicated region
    $region30: #{tpu_custom_call.1} parent=1 // pred_check
      _
    $region31: #{tpu_custom_call.1} parent=1 // pred_check_branch
      %267 = sbr.rel (0) target = $region33
    $region32: #{tpu_custom_call.1} parent=1 // pred_region
      %268 = dma.done [#allocation4], 256
    $region33: #{tpu_custom_call.1} parent=1 // pred_fallthru
      _
    %269 = vsyncpa [#allocation3], 1
    %270 = vsyncpa [#allocation6], 1
    %271 = vsyncpa [#allocation4], 1

</llo_original>
